<compile_context>
chip_gen: v7x
topology: tpu7x:2x2x1
jax: 0.10.0
libtpu: 0.0.40
codegen_flags: <defaults>
</compile_context>

<pallas_src>
import functools

import jax
import jax.numpy as jnp
from jax.experimental import pallas as pl
from jax.experimental.pallas import tpu as pltpu


LANE = 128
PAD_UNIT = 256                         # N padding granularity (decoupled from tile size)
RESIDENT_Y_BUDGET = 24 * 1024 * 1024   # bytes (incl. 2x buffering) allowed for resident rhs


def _round_up(x, m):
    return ((x + m - 1) // m) * m


def _vmem_limit_bytes():
    """Per-generation scoped VMEM limit: ~3/4 of physical (48 MiB v7x, 96 MiB v5e/v6e)."""
    try:
        cap = pltpu.get_tpu_info().vmem_capacity_bytes
    except Exception:
        cap = 128 * 1024 * 1024
    return min((cap * 3) // 4, 96 * 1024 * 1024)


def _pick_tile(n_pad, candidates, upper=None):
    upper = n_pad if upper is None else upper
    for c in candidates:
        if c <= upper and n_pad % c == 0:
            return c
    return None


def _choose_tiles(n_pad):
    # Row tile: prefer >= 2 row tiles (v7x has 2 TensorCores sharing the "parallel" axis).
    tm = _pick_tile(n_pad, (1024, 512, 256, 128), upper=n_pad // 2)
    if tm is None:
        tm = _pick_tile(n_pad, (1024, 512, 256, 128))
    # Reduction tile: longer contiguous lane-axis DMAs on L, amortizes per-step overhead.
    tk = _pick_tile(n_pad, (2048, 1024, 512, 256, 128))
    return tm, tk


# ----------------------------- theta: X @ W + b ------------------------------

def theta_kernel(x_ref, w_ref, b_ref, out_ref):
    out_ref[...] = (
        jnp.dot(x_ref[...], w_ref[...], preferred_element_type=jnp.float32)
        + b_ref[...]
    ).astype(out_ref.dtype)


def theta(x, w, b, *, tm, out_dtype, vmem_limit):
    n, c_in = x.shape
    c_out = w.shape[1]
    flops = 2 * n * c_in * c_out
    bytes_accessed = (x.size * x.dtype.itemsize + w.size * w.dtype.itemsize
                      + b.size * b.dtype.itemsize
                      + n * c_out * jnp.dtype(out_dtype).itemsize)
    return pl.pallas_call(
        theta_kernel,
        out_shape=jax.ShapeDtypeStruct((n, c_out), out_dtype),
        grid_spec=pltpu.PrefetchScalarGridSpec(
            num_scalar_prefetch=0,
            grid=(n // tm,),
            in_specs=[
                pl.BlockSpec((tm, c_in), lambda i: (i, 0)),
                pl.BlockSpec((c_in, c_out), lambda i: (0, 0)),
                pl.BlockSpec((1, c_out), lambda i: (0, 0)),
            ],
            out_specs=pl.BlockSpec((tm, c_out), lambda i: (i, 0)),
        ),
        compiler_params=pltpu.CompilerParams(
            dimension_semantics=("parallel",),
            vmem_limit_bytes=vmem_limit,
        ),
        cost_estimate=pl.CostEstimate(
            flops=flops, transcendentals=0, bytes_accessed=bytes_accessed),
    )(x, w, b)


# ---------- layer-1 smoothing with fused layer-2 theta + ReLU ----------------
#   out = relu(L @ Y) @ W2 + b2     (bf16 output for the next MXU pass)

def smoothing_fused_theta_kernel(l_ref, y_ref, w2_ref, b2_ref, out_ref, acc_ref,
                                 *, tk, resident_y):
    k = pl.program_id(1)

    @pl.when(k == 0)
    def _():
        acc_ref[...] = jnp.zeros_like(acc_ref)

    if resident_y:
        off = pl.multiple_of(k * tk, tk)
        yk = y_ref[pl.ds(off, tk), :]
    else:
        yk = y_ref[...]
    acc_ref[...] += jnp.dot(l_ref[...], yk, preferred_element_type=jnp.float32)

    @pl.when(k == pl.num_programs(1) - 1)
    def _():
        h1 = jnp.maximum(acc_ref[...], 0.0).astype(w2_ref.dtype)     # fused ReLU
        out_ref[...] = (
            jnp.dot(h1, w2_ref[...], preferred_element_type=jnp.float32) + b2_ref[...]
        ).astype(out_ref.dtype)


def smoothing_fused_theta(lap, y, w2, b2, *, tm, tk, out_dtype, vmem_limit):
    n = lap.shape[0]
    c_hid = y.shape[1]
    c_out = w2.shape[1]
    resident_y = 2 * y.size * y.dtype.itemsize <= RESIDENT_Y_BUDGET
    if resident_y:
        y_spec = pl.BlockSpec((n, c_hid), lambda i, k: (0, 0))   # DMA'd once, VMEM-resident
    else:
        y_spec = pl.BlockSpec((tk, c_hid), lambda i, k: (k, 0))

    y_reads = 1 if resident_y else n // tm
    flops = 2 * n * n * c_hid + 2 * n * c_hid * c_out
    bytes_accessed = (n * n * lap.dtype.itemsize
                      + y_reads * n * c_hid * y.dtype.itemsize
                      + w2.size * w2.dtype.itemsize + b2.size * b2.dtype.itemsize
                      + n * c_out * jnp.dtype(out_dtype).itemsize)
    kernel = functools.partial(smoothing_fused_theta_kernel, tk=tk, resident_y=resident_y)
    return pl.pallas_call(
        kernel,
        out_shape=jax.ShapeDtypeStruct((n, c_out), out_dtype),
        grid_spec=pltpu.PrefetchScalarGridSpec(
            num_scalar_prefetch=0,
            grid=(n // tm, n // tk),               # reduction (k) axis last
            in_specs=[
                pl.BlockSpec((tm, tk), lambda i, k: (i, k)),
                y_spec,
                pl.BlockSpec((c_hid, c_out), lambda i, k: (0, 0)),
                pl.BlockSpec((1, c_out), lambda i, k: (0, 0)),
            ],
            out_specs=pl.BlockSpec((tm, c_out), lambda i, k: (i, 0)),
            scratch_shapes=[pltpu.VMEM((tm, c_hid), jnp.float32)],
        ),
        compiler_params=pltpu.CompilerParams(
            dimension_semantics=("parallel", "arbitrary"),
            vmem_limit_bytes=vmem_limit,
        ),
        cost_estimate=pl.CostEstimate(
            flops=flops, transcendentals=0, bytes_accessed=bytes_accessed),
    )(lap, y, w2, b2)


# --------------------- layer-2 smoothing: out = L @ Y (f32) -------------------
# f32 output accumulated directly into the resident out_ref (no scratch).

def smoothing_kernel(l_ref, y_ref, out_ref, *, tk, resident_y):
    k = pl.program_id(1)

    @pl.when(k == 0)
    def _():
        out_ref[...] = jnp.zeros_like(out_ref)

    if resident_y:
        off = pl.multiple_of(k * tk, tk)
        yk = y_ref[pl.ds(off, tk), :]
    else:
        yk = y_ref[...]
    out_ref[...] += jnp.dot(l_ref[...], yk, preferred_element_type=jnp.float32)


def smoothing(lap, y, *, tm, tk, vmem_limit):
    n = lap.shape[0]
    c = y.shape[1]
    resident_y = 2 * y.size * y.dtype.itemsize <= RESIDENT_Y_BUDGET
    if resident_y:
        y_spec = pl.BlockSpec((n, c), lambda i, k: (0, 0))
    else:
        y_spec = pl.BlockSpec((tk, c), lambda i, k: (k, 0))

    y_reads = 1 if resident_y else n // tm
    flops = 2 * n * n * c
    bytes_accessed = (n * n * lap.dtype.itemsize
                      + y_reads * n * c * y.dtype.itemsize
                      + n * c * 4)
    kernel = functools.partial(smoothing_kernel, tk=tk, resident_y=resident_y)
    return pl.pallas_call(
        kernel,
        out_shape=jax.ShapeDtypeStruct((n, c), jnp.float32),
        grid_spec=pltpu.PrefetchScalarGridSpec(
            num_scalar_prefetch=0,
            grid=(n // tm, n // tk),
            in_specs=[
                pl.BlockSpec((tm, tk), lambda i, k: (i, k)),
                y_spec,
            ],
            out_specs=pl.BlockSpec((tm, c), lambda i, k: (i, 0)),
        ),
        compiler_params=pltpu.CompilerParams(
            dimension_semantics=("parallel", "arbitrary"),
            vmem_limit_bytes=vmem_limit,
        ),
        cost_estimate=pl.CostEstimate(
            flops=flops, transcendentals=0, bytes_accessed=bytes_accessed),
    )(lap, y)


# ------------------------ one-time parameter preparation ----------------------

def prepare_hgnn_params(lap, w1, b1, w2, b2, *, lap_dtype=jnp.bfloat16):
    """Pad/cast L and the weights ONCE (hoisted out of the per-forward path)."""
    n = lap.shape[0]
    c_in, c_hid = w1.shape
    c_out = w2.shape[1]
    n_pad = 128 if n <= 128 else _round_up(n, PAD_UNIT)
    c_in_p, c_hid_p, c_out_p = (_round_up(c, LANE) for c in (c_in, c_hid, c_out))

    bf16, f32 = jnp.bfloat16, jnp.float32
    lap_p = jnp.zeros((n_pad, n_pad), lap_dtype).at[:n, :n].set(lap.astype(lap_dtype))
    w1_p = jnp.zeros((c_in_p, c_hid_p), bf16).at[:c_in, :c_hid].set(w1.astype(bf16))
    b1_p = jnp.zeros((1, c_hid_p), f32).at[:, :c_hid].set(b1.reshape(1, -1).astype(f32))
    w2_p = jnp.zeros((c_hid_p, c_out_p), bf16).at[:c_hid, :c_out].set(w2.astype(bf16))
    b2_p = jnp.zeros((1, c_out_p), f32).at[:, :c_out].set(b2.reshape(1, -1).astype(f32))
    return dict(lap=lap_p, w1=w1_p, b1=b1_p, w2=w2_p, b2=b2_p,
                n=n, n_pad=n_pad, c_in=c_in, c_in_p=c_in_p,
                c_hid=c_hid, c_out=c_out, c_out_p=c_out_p)


# ------------------------------ full forward ---------------------------------

def hgnn_forward(x, params):
    n, n_pad = params["n"], params["n_pad"]
    c_in, c_in_p = params["c_in"], params["c_in_p"]
    c_out = params["c_out"]

    tm, tk = _choose_tiles(n_pad)
    vmem_limit = _vmem_limit_bytes()

    x_p = jnp.zeros((n_pad, c_in_p), jnp.bfloat16).at[:n, :c_in].set(
        x.astype(jnp.bfloat16))

    # layer 1 theta: xw1 = X @ W1 + b1
    xw1 = theta(x_p, params["w1"], params["b1"], tm=tm, out_dtype=jnp.bfloat16,
                vmem_limit=vmem_limit)
    # layer 1 smoothing + fused layer 2 theta + ReLU: xw2 = relu(L @ xw1) @ W2 + b2
    # (dropout = identity in eval)
    xw2 = smoothing_fused_theta(params["lap"], xw1, params["w2"], params["b2"],
                                tm=tm, tk=tk, out_dtype=jnp.bfloat16,
                                vmem_limit=vmem_limit)
    # layer 2 smoothing (is_last=True, no activation): out = L @ xw2
    out_p = smoothing(params["lap"], xw2, tm=tm, tk=tk, vmem_limit=vmem_limit)
    return out_p[:n, :c_out]


# -------------------------- structure / param setup ---------------------------

def build_smoothing_matrix(key, num_v, num_e):
    """Precompute L = D_v^{-1/2} H W_e D_e^{-1} H^T D_v^{-1/2} (plain JAX glue)."""
    h = (jax.random.uniform(key, (num_v, num_e)) < 0.3).astype(jnp.float32)
    h = h.at[jnp.arange(num_v), jnp.arange(num_v) % num_e].set(1.0)
    w_e = jnp.ones((num_e,), jnp.float32)                     # hyperedge weights
    d_v = (h * w_e[None, :]).sum(axis=1)                      # vertex degrees
    d_e = h.sum(axis=0)                                       # hyperedge degrees
    dv_inv_sqrt = 1.0 / jnp.sqrt(d_v)
    de_inv = 1.0 / d_e
    hw = h * (w_e * de_inv)[None, :]
    lap = (dv_inv_sqrt[:, None] * hw) @ (h.T * dv_inv_sqrt[None, :])
    return lap


def init_linear(key, fan_in, fan_out):
    """Deterministic nn.Linear-style init: U(-1/sqrt(fan_in), 1/sqrt(fan_in))."""
    kw, kb = jax.random.split(key)
    bound = 1.0 / jnp.sqrt(jnp.float32(fan_in))
    w = jax.random.uniform(kw, (fan_in, fan_out), jnp.float32, -bound, bound)
    b = jax.random.uniform(kb, (1, fan_out), jnp.float32, -bound, bound)
    return w, b


if __name__ == "__main__":
    key = jax.random.PRNGKey(0)
    k_x, k_h, k_l1, k_l2 = jax.random.split(key, 4)

    # Small shapes: N vertices, E hyperedges, channels in/hid/out.
    num_v, num_e = 64, 32
    c_in, c_hid, c_out = 32, 32, 8

    x = jax.random.normal(k_x, (num_v, c_in), jnp.float32)
    lap = build_smoothing_matrix(k_h, num_v, num_e)
    w1, b1 = init_linear(k_l1, c_in, c_hid)
    w2, b2 = init_linear(k_l2, c_hid, c_out)

    # One-time prep (L pad/cast hoisted out of the per-forward path).
    params = prepare_hgnn_params(lap, w1, b1, w2, b2)
    jax.block_until_ready(params["lap"])

    out = hgnn_forward(x, params)
    jax.block_until_ready(out)

    # Pure-JAX f32 reference; loose tolerance because L/X/W are streamed in bf16.
    ref = lap @ (jnp.maximum(lap @ (x @ w1 + b1), 0.0) @ w2 + b2)
    assert out.shape == (num_v, c_out)
    err = float(jnp.max(jnp.abs(out - ref)))
    assert jnp.allclose(out, ref, atol=5e-2, rtol=5e-2), f"max abs err {err}"

    print("KERNEL_OK")
</pallas_src>

<mosaic_0001>
module attributes {stable_mosaic.version = 11 : i64} {
  func.func @theta_kernel(%arg0: i32, %arg1: memref<128x128xbf16, #tpu.memory_space<vmem>>, %arg2: memref<128x128xbf16, #tpu.memory_space<vmem>>, %arg3: memref<1x128xf32, #tpu.memory_space<vmem>>, %arg4: memref<128x128xbf16, #tpu.memory_space<vmem>>) attributes {dimension_semantics = [#tpu.dimension_semantics<parallel>], iteration_bounds = array<i64: 1>, scalar_prefetch = 0 : i64, scratch_operands = 0 : i64, tpu.core_type = #tpu.core_type<tc>, window_params = [{transform_indices = @transform_0, window_bounds = array<i64: 128, 128>}, {pipeline_mode = #tpu.pipeline_mode<synchronous>, transform_indices = @transform_1, window_bounds = array<i64: 128, 128>}, {pipeline_mode = #tpu.pipeline_mode<synchronous>, transform_indices = @transform_2, window_bounds = array<i64: 1, 128>}, {transform_indices = @transform_3, window_bounds = array<i64: 128, 128>}]} {
    %c0 = arith.constant 0 : index
    %c0_0 = arith.constant 0 : index
    %0 = vector.load %arg1[%c0, %c0_0] : memref<128x128xbf16, #tpu.memory_space<vmem>>, vector<128x128xbf16>
    %c0_1 = arith.constant 0 : index
    %c0_2 = arith.constant 0 : index
    %1 = vector.load %arg2[%c0_1, %c0_2] : memref<128x128xbf16, #tpu.memory_space<vmem>>, vector<128x128xbf16>
    %cst = arith.constant dense<0.000000e+00> : vector<128x128xf32>
    %2 = tpu.matmul %0, %1, %cst {dimension_numbers = #tpu.dot_dimension_numbers<[1], [0], [0], [1], [0, 0, 1, 1], [], []>} : vector<128x128xbf16>, vector<128x128xbf16>, vector<128x128xf32> -> vector<128x128xf32>
    %c0_3 = arith.constant 0 : index
    %c0_4 = arith.constant 0 : index
    %3 = vector.load %arg3[%c0_3, %c0_4] : memref<1x128xf32, #tpu.memory_space<vmem>>, vector<1x128xf32>
    %4 = vector.broadcast %3 : vector<1x128xf32> to vector<128x128xf32>
    %5 = arith.addf %2, %4 : vector<128x128xf32>
    %6 = arith.truncf %5 : vector<128x128xf32> to vector<128x128xbf16>
    %c0_5 = arith.constant 0 : index
    %c0_6 = arith.constant 0 : index
    %7 = vector.load %arg4[%c0_5, %c0_6] : memref<128x128xbf16, #tpu.memory_space<vmem>>, vector<128x128xbf16>
    tpu.vector_store %arg4[%c0_5, %c0_6], %6 {strides = array<i32>} : memref<128x128xbf16, #tpu.memory_space<vmem>>, vector<128x128xbf16>,
    return
  }
  func.func @transform_0(%arg0: i32) -> (i32, i32) {
    %c0_i32 = arith.constant 0 : i32
    %c0_i32_0 = arith.constant 0 : i32
    return %arg0, %c0_i32 : i32, i32
  }
  func.func @transform_1(%arg0: i32) -> (i32, i32) {
    %c0_i32 = arith.constant 0 : i32
    %c0_i32_0 = arith.constant 0 : i32
    %c0_i32_1 = arith.constant 0 : i32
    return %c0_i32, %c0_i32_0 : i32, i32
  }
  func.func @transform_2(%arg0: i32) -> (i32, i32) {
    %c0_i32 = arith.constant 0 : i32
    %c0_i32_0 = arith.constant 0 : i32
    %c0_i32_1 = arith.constant 0 : i32
    return %c0_i32, %c0_i32_0 : i32, i32
  }
  func.func @transform_3(%arg0: i32) -> (i32, i32) {
    %c0_i32 = arith.constant 0 : i32
    %c0_i32_0 = arith.constant 0 : i32
    return %arg0, %c0_i32 : i32, i32
  }
}

</mosaic_0001>

<llo_original>
// kernel: tpu_custom_call.1
$region0: #{tpu_custom_call.1}
  #allocation0 [shape = 'u32[]', space=smem, size = 0x4, offset = 0x4, fixed_abs, tag = 'smem constant byte address 0x4 - core index']
  #allocation1 [shape = 'u32[144,128]{1,0:T(1,128)}', space=vmem, size = 0x12000, scoped, tag = 'internal scratch']
  %s0 = inlined_call_operand.hbm [shape: bf16[128,128], index: 0, kind: input, shape index: {}]
  %s1 = inlined_call_operand.hbm [shape: bf16[128,128], index: 1, kind: input, shape index: {}]
  %s2 = inlined_call_operand.hbm [shape: f32[1,128], index: 2, kind: input, shape index: {}]
  %s3 = inlined_call_operand.hbm [shape: bf16[128,128], index: 3, kind: output, shape index: {}]
  %s4 = sld [smem:[#allocation0]]
  $region34: #{tpu_custom_call.1} parent=0
    _
  %s6 = ssub.s32 1, %s4
  %s7 = scalar_select 0, %s6, %s4
  $region1: #{tpu_custom_call.1} parent=0
    #allocation2 [shape = 'u8[32768]{0}', space=vmem, size = 0x8000, scoped, tag = 'input window, operand 0, single buffered']
    #allocation3 [shape = 's32[1]{0}', space=sflag, size = 0x4, scoped, tag = 'scoped memory for tpu_custom_call.1']
    #allocation4 [shape = 's32[1]{0}', space=sflag, size = 0x4, scoped, tag = 'scoped memory for tpu_custom_call.1']
    #allocation5 [shape = 'u8[32768]{0}', space=vmem, size = 0x8000, scoped, tag = 'input window, operand 1, single buffered']
    #allocation6 [shape = 's32[1]{0}', space=sflag, size = 0x4, scoped, tag = 'scoped memory for tpu_custom_call.1']
    #allocation7 [shape = 'u8[512]{0}', space=vmem, size = 0x400, scoped, tag = 'input window, operand 2, single buffered']
    #allocation8 [shape = 'u8[32768]{0}', space=vmem, size = 0x8000, scoped, tag = 'output window, operand 0, single buffered']
    %8 = vsyncpa [#allocation3], 0
    %9 = vsyncpa [#allocation6], 0
    %10 = vsyncpa [#allocation4], 0
    // Predicated region
    $region2: #{tpu_custom_call.1} parent=1 // pred_check
      _
    $region3: #{tpu_custom_call.1} parent=1 // pred_check_branch
      %12 = sbr.rel (0) target = $region5
    $region4: #{tpu_custom_call.1} parent=1 // pred_region
      %s14 = ssub.s32 1024, 1024
      %15 = vsyncadd [#allocation3], %s14
      %s16 = sshll.u32 [#allocation2], 4
      %s17 = int_to_ptr.vmem [resolvable:$true] %s16
      %22 = dma.hbm_to_vmem [thread:$0]  %s0, 1024, %s17, [#allocation3], 64, 64, 4
    $region5: #{tpu_custom_call.1} parent=1 // pred_fallthru
      _
    // Predicated region
    $region6: #{tpu_custom_call.1} parent=1 // pred_check
      _
    $region7: #{tpu_custom_call.1} parent=1 // pred_check_branch
      %24 = sbr.rel (0) target = $region9
    $region8: #{tpu_custom_call.1} parent=1 // pred_region
      %s26 = ssub.s32 1024, 1024
      %27 = vsyncadd [#allocation6], %s26
      %s28 = sshll.u32 [#allocation5], 4
      %s29 = int_to_ptr.vmem [resolvable:$true] %s28
      %34 = dma.hbm_to_vmem [thread:$0]  %s1, 1024, %s29, [#allocation6], 64, 64, 4
    $region9: #{tpu_custom_call.1} parent=1 // pred_fallthru
      _
    // Predicated region
    $region10: #{tpu_custom_call.1} parent=1 // pred_check
      _
    $region11: #{tpu_custom_call.1} parent=1 // pred_check_branch
      %36 = sbr.rel (0) target = $region13
    $region12: #{tpu_custom_call.1} parent=1 // pred_region
      %s38 = ssub.s32 16, 16
      %39 = vsyncadd [#allocation6], %s38
      %s41 = sshll.u32 [#allocation7], 4
      %s42 = int_to_ptr.vmem [resolvable:$true] %s41
      %44 = dma.hbm_to_vmem [thread:$0]  %s2, 16, %s42, [#allocation6]
    $region13: #{tpu_custom_call.1} parent=1 // pred_fallthru
      _
    // Predicated region
    $region14: #{tpu_custom_call.1} parent=1 // pred_check
      _
    $region15: #{tpu_custom_call.1} parent=1 // pred_check_branch
      %46 = sbr.rel (0) target = $region17
    $region16: #{tpu_custom_call.1} parent=1 // pred_region
      %47 = dma.done [#allocation3], 1024
    $region17: #{tpu_custom_call.1} parent=1 // pred_fallthru
      _
    // Predicated region
    $region18: #{tpu_custom_call.1} parent=1 // pred_check
      _
    $region19: #{tpu_custom_call.1} parent=1 // pred_check_branch
      %49 = sbr.rel (0) target = $region21
    $region20: #{tpu_custom_call.1} parent=1 // pred_region
      %50 = dma.done [#allocation6], 1024
    $region21: #{tpu_custom_call.1} parent=1 // pred_fallthru
      _
    // Predicated region
    $region22: #{tpu_custom_call.1} parent=1 // pred_check
      _
    $region23: #{tpu_custom_call.1} parent=1 // pred_check_branch
      %52 = sbr.rel (0) target = $region25
    $region24: #{tpu_custom_call.1} parent=1 // pred_region
      %53 = dma.done [#allocation6], 16
    $region25: #{tpu_custom_call.1} parent=1 // pred_fallthru
      _
    %v55 = vld [vmem:[#allocation2] sm:$0xf]
    %v56 = vld [vmem:[#allocation2 + $0x4] sm:$0xf]
    %v57 = vld [vmem:[#allocation2 + $0x8] sm:$0xf]
    %v58 = vld [vmem:[#allocation2 + $0xc] sm:$0xf]
    %v59 = vld [vmem:[#allocation2 + $0x10] sm:$0xf]
    %v60 = vld [vmem:[#allocation2 + $0x14] sm:$0xf]
    %v61 = vld [vmem:[#allocation2 + $0x18] sm:$0xf]
    %v62 = vld [vmem:[#allocation2 + $0x1c] sm:$0xf]
    %v63 = vld [vmem:[#allocation2 + $0x20] sm:$0xf]
    %v64 = vld [vmem:[#allocation2 + $0x24] sm:$0xf]
    %v65 = vld [vmem:[#allocation2 + $0x28] sm:$0xf]
    %v66 = vld [vmem:[#allocation2 + $0x2c] sm:$0xf]
    %v67 = vld [vmem:[#allocation2 + $0x30] sm:$0xf]
    %v68 = vld [vmem:[#allocation2 + $0x34] sm:$0xf]
    %v69 = vld [vmem:[#allocation2 + $0x38] sm:$0xf]
    %v70 = vld [vmem:[#allocation2 + $0x3c] sm:$0xf]
    %v71 = vld [vmem:[#allocation5] sm:$0xf]
    %v72 = vld [vmem:[#allocation5 + $0x4] sm:$0xf]
    %v73 = vld [vmem:[#allocation5 + $0x8] sm:$0xf]
    %v74 = vld [vmem:[#allocation5 + $0xc] sm:$0xf]
    %v75 = vld [vmem:[#allocation5 + $0x10] sm:$0xf]
    %v76 = vld [vmem:[#allocation5 + $0x14] sm:$0xf]
    %v77 = vld [vmem:[#allocation5 + $0x18] sm:$0xf]
    %v78 = vld [vmem:[#allocation5 + $0x1c] sm:$0xf]
    %v79 = vld [vmem:[#allocation5 + $0x20] sm:$0xf]
    %v80 = vld [vmem:[#allocation5 + $0x24] sm:$0xf]
    %v81 = vld [vmem:[#allocation5 + $0x28] sm:$0xf]
    %v82 = vld [vmem:[#allocation5 + $0x2c] sm:$0xf]
    %v83 = vld [vmem:[#allocation5 + $0x30] sm:$0xf]
    %v84 = vld [vmem:[#allocation5 + $0x34] sm:$0xf]
    %v85 = vld [vmem:[#allocation5 + $0x38] sm:$0xf]
    %v86 = vld [vmem:[#allocation5 + $0x3c] sm:$0xf]
    %v87 = vld [vmem:[#allocation7] sm:$0x1]
    %v89 = vlaneseq
    %v90 = vshrl.u32 %v89, 7
    %v91 = vsub.s32 0, %v90
    %v92 = vrot.slane %v87, %v91
    %v110 = vunpack.c.l.b16 %v55
    %v111 = vunpack.c.l.b16 %v56
    %v112 = vunpack.c.l.b16 %v57
    %v113 = vunpack.c.l.b16 %v58
    %v114 = vunpack.c.l.b16 %v59
    %v115 = vunpack.c.l.b16 %v60
    %v116 = vunpack.c.l.b16 %v61
    %v117 = vunpack.c.l.b16 %v62
    %v118 = vunpack.c.l.b16 %v63
    %v119 = vunpack.c.l.b16 %v64
    %v120 = vunpack.c.l.b16 %v65
    %v121 = vunpack.c.l.b16 %v66
    %v122 = vunpack.c.l.b16 %v67
    %v123 = vunpack.c.l.b16 %v68
    %v124 = vunpack.c.l.b16 %v69
    %v125 = vunpack.c.l.b16 %v70
    %v126 = vpack.c.b16 %v111, %v110
    %v127 = vpack.c.b16 %v113, %v112
    %v128 = vpack.c.b16 %v115, %v114
    %v129 = vpack.c.b16 %v117, %v116
    %v130 = vpack.c.b16 %v119, %v118
    %v131 = vpack.c.b16 %v121, %v120
    %v132 = vpack.c.b16 %v123, %v122
    %v133 = vpack.c.b16 %v125, %v124
    %v158 = vunpack.c.l.b16 %v71
    %v159 = vunpack.c.l.b16 %v72
    %v160 = vunpack.c.l.b16 %v73
    %v161 = vunpack.c.l.b16 %v74
    %v162 = vunpack.c.l.b16 %v75
    %v163 = vunpack.c.l.b16 %v76
    %v164 = vunpack.c.l.b16 %v77
    %v165 = vunpack.c.l.b16 %v78
    %v166 = vunpack.c.l.b16 %v79
    %v167 = vunpack.c.l.b16 %v80
    %v168 = vunpack.c.l.b16 %v81
    %v169 = vunpack.c.l.b16 %v82
    %v170 = vunpack.c.l.b16 %v83
    %v171 = vunpack.c.l.b16 %v84
    %v172 = vunpack.c.l.b16 %v85
    %v173 = vunpack.c.l.b16 %v86
    %v174 = vpack.c.b16 %v159, %v158
    %v175 = vpack.c.b16 %v161, %v160
    %v176 = vpack.c.b16 %v163, %v162
    %v177 = vpack.c.b16 %v165, %v164
    %v178 = vpack.c.b16 %v167, %v166
    %v179 = vpack.c.b16 %v169, %v168
    %v180 = vpack.c.b16 %v171, %v170
    %v181 = vpack.c.b16 %v173, %v172
    %190 = vmatprep.subr.bf16.mxu0 0
    %191 = vmatpush1.bf16.msra.mxu0 %v174
    %192 = vmatprep.subr.bf16.mxu0 0
    %193 = vmatpush1.bf16.msra.mxu0 %v175
    %194 = vmatprep.subr.bf16.mxu0 0
    %195 = vmatpush1.bf16.msra.mxu0 %v176
    %196 = vmatprep.subr.bf16.mxu0 0
    %197 = vmatpush1.bf16.msra.mxu0 %v177
    %198 = vmatprep.subr.bf16.mxu0 0
    %199 = vmatpush1.bf16.msra.mxu0 %v178
    %200 = vmatprep.subr.bf16.mxu0 0
    %201 = vmatpush1.bf16.msra.mxu0 %v179
    %202 = vmatprep.subr.bf16.mxu0 0
    %203 = vmatpush1.bf16.msra.mxu0 %v180
    %204 = vmatprep.subr.bf16.mxu0 0
    %205 = vmatpush1.bf16.msra.mxu0 %v181
    %206 = vmatprep.subr.bf16.mxu0 0
    %207 = vmatpush1.bf16.msra.mxu0 0
    %208 = vmatprep.subr.bf16.mxu0 0
    %209 = vmatpush1.bf16.msra.mxu0 0
    %210 = vmatprep.subr.bf16.mxu0 0
    %211 = vmatpush1.bf16.msra.mxu0 0
    %212 = vmatprep.subr.bf16.mxu0 0
    %213 = vmatpush1.bf16.msra.mxu0 0
    %214 = vmatprep.subr.bf16.mxu0 0
    %215 = vmatpush1.bf16.msra.mxu0 0
    %216 = vmatprep.subr.bf16.mxu0 0
    %217 = vmatpush1.bf16.msra.mxu0 0
    %218 = vmatprep.subr.bf16.mxu0 0
    %219 = vmatpush1.bf16.msra.mxu0 0
    %220 = vmatprep.subr.bf16.mxu0 0
    %221 = vmatpush1.bf16.msra.mxu0 0
    %222 = vmatprep.mubr.bf16.mxu0 0
    %223 = vmatmul.mubr.bf16.gmra.mrb[0].mxu0 %v126
    %v224 = vpop.f32.mrb[0].mxu0
    %v225 = vadd.f32 %v92, %v224
    %v226 = vpop.f32.mrb[0].mxu0
    %v227 = vpop.f32.mrb[0].mxu0
    %v228 = vadd.f32 %v92, %v227
    %v229 = vpop.f32.mrb[0].mxu0
    %230 = vmatprep.mubr.bf16.mxu0 0
    %231 = vmatmul.mubr.bf16.gmra.mrb[0].mxu0 %v127
    %v232 = vpop.f32.mrb[0].mxu0
    %v233 = vadd.f32 %v92, %v232
    %v234 = vpop.f32.mrb[0].mxu0
    %v235 = vpop.f32.mrb[0].mxu0
    %v236 = vadd.f32 %v92, %v235
    %v237 = vpop.f32.mrb[0].mxu0
    %238 = vmatprep.mubr.bf16.mxu0 0
    %239 = vmatmul.mubr.bf16.gmra.mrb[0].mxu0 %v128
    %v240 = vpop.f32.mrb[0].mxu0
    %v241 = vadd.f32 %v92, %v240
    %v242 = vpop.f32.mrb[0].mxu0
    %v243 = vpop.f32.mrb[0].mxu0
    %v244 = vadd.f32 %v92, %v243
    %v245 = vpop.f32.mrb[0].mxu0
    %246 = vmatprep.mubr.bf16.mxu0 0
    %247 = vmatmul.mubr.bf16.gmra.mrb[0].mxu0 %v129
    %v248 = vpop.f32.mrb[0].mxu0
    %v249 = vadd.f32 %v92, %v248
    %v250 = vpop.f32.mrb[0].mxu0
    %v251 = vpop.f32.mrb[0].mxu0
    %v252 = vadd.f32 %v92, %v251
    %v253 = vpop.f32.mrb[0].mxu0
    %254 = vmatprep.mubr.bf16.mxu0 0
    %255 = vmatmul.mubr.bf16.gmra.mrb[0].mxu0 %v130
    %v256 = vpop.f32.mrb[0].mxu0
    %v257 = vadd.f32 %v92, %v256
    %v258 = vpop.f32.mrb[0].mxu0
    %v259 = vpop.f32.mrb[0].mxu0
    %v260 = vadd.f32 %v92, %v259
    %v261 = vpop.f32.mrb[0].mxu0
    %262 = vmatprep.mubr.bf16.mxu0 0
    %263 = vmatmul.mubr.bf16.gmra.mrb[0].mxu0 %v131
    %v264 = vpop.f32.mrb[0].mxu0
    %v265 = vadd.f32 %v92, %v264
    %v266 = vpop.f32.mrb[0].mxu0
    %v267 = vpop.f32.mrb[0].mxu0
    %v268 = vadd.f32 %v92, %v267
    %v269 = vpop.f32.mrb[0].mxu0
    %270 = vmatprep.mubr.bf16.mxu0 0
    %271 = vmatmul.mubr.bf16.gmra.mrb[0].mxu0 %v132
    %v272 = vpop.f32.mrb[0].mxu0
    %v273 = vadd.f32 %v92, %v272
    %v274 = vpop.f32.mrb[0].mxu0
    %v275 = vpop.f32.mrb[0].mxu0
    %v276 = vadd.f32 %v92, %v275
    %v277 = vpop.f32.mrb[0].mxu0
    %278 = vmatprep.mubr.bf16.mxu0 0
    %279 = vmatmul.mubr.bf16.gmra.mrb[0].mxu0 %v133
    %v280 = vpop.f32.mrb[0].mxu0
    %v281 = vadd.f32 %v92, %v280
    %v282 = vpop.f32.mrb[0].mxu0
    %v283 = vpop.f32.mrb[0].mxu0
    %v284 = vadd.f32 %v92, %v283
    %v285 = vpop.f32.mrb[0].mxu0
    %286 = vdwg.mxu0
    %v287 = vpack.c.bf16 %v228, %v225
    %v288 = vpack.c.bf16 %v236, %v233
    %v289 = vpack.c.bf16 %v244, %v241
    %v290 = vpack.c.bf16 %v252, %v249
    %v291 = vpack.c.bf16 %v260, %v257
    %v292 = vpack.c.bf16 %v268, %v265
    %v293 = vpack.c.bf16 %v276, %v273
    %v294 = vpack.c.bf16 %v284, %v281
    %v303 = vunpack.c.l.b16 %v287
    %v304 = vunpack.c.h.b16 %v287
    %v305 = vunpack.c.l.b16 %v288
    %v306 = vunpack.c.h.b16 %v288
    %v307 = vunpack.c.l.b16 %v289
    %v308 = vunpack.c.h.b16 %v289
    %v309 = vunpack.c.l.b16 %v290
    %v310 = vunpack.c.h.b16 %v290
    %v311 = vunpack.c.l.b16 %v291
    %v312 = vunpack.c.h.b16 %v291
    %v313 = vunpack.c.l.b16 %v292
    %v314 = vunpack.c.h.b16 %v292
    %v315 = vunpack.c.l.b16 %v293
    %v316 = vunpack.c.h.b16 %v293
    %v317 = vunpack.c.l.b16 %v294
    %v318 = vunpack.c.h.b16 %v294
    %v319 = vpack.c.b16 %v303, %v303
    %v320 = vpack.c.b16 %v304, %v304
    %v321 = vpack.c.b16 %v305, %v305
    %v322 = vpack.c.b16 %v306, %v306
    %v323 = vpack.c.b16 %v307, %v307
    %v324 = vpack.c.b16 %v308, %v308
    %v325 = vpack.c.b16 %v309, %v309
    %v326 = vpack.c.b16 %v310, %v310
    %v327 = vpack.c.b16 %v311, %v311
    %v328 = vpack.c.b16 %v312, %v312
    %v329 = vpack.c.b16 %v313, %v313
    %v330 = vpack.c.b16 %v314, %v314
    %v331 = vpack.c.b16 %v315, %v315
    %v332 = vpack.c.b16 %v316, %v316
    %v333 = vpack.c.b16 %v317, %v317
    %v334 = vpack.c.b16 %v318, %v318
    %351 = vst [vmem:[#allocation8] sm:$0xf] %v319
    %352 = vst [vmem:[#allocation8 + $0x4] sm:$0xf] %v320
    %353 = vst [vmem:[#allocation8 + $0x8] sm:$0xf] %v321
    %354 = vst [vmem:[#allocation8 + $0xc] sm:$0xf] %v322
    %355 = vst [vmem:[#allocation8 + $0x10] sm:$0xf] %v323
    %356 = vst [vmem:[#allocation8 + $0x14] sm:$0xf] %v324
    %357 = vst [vmem:[#allocation8 + $0x18] sm:$0xf] %v325
    %358 = vst [vmem:[#allocation8 + $0x1c] sm:$0xf] %v326
    %359 = vst [vmem:[#allocation8 + $0x20] sm:$0xf] %v327
    %360 = vst [vmem:[#allocation8 + $0x24] sm:$0xf] %v328
    %361 = vst [vmem:[#allocation8 + $0x28] sm:$0xf] %v329
    %362 = vst [vmem:[#allocation8 + $0x2c] sm:$0xf] %v330
    %363 = vst [vmem:[#allocation8 + $0x30] sm:$0xf] %v331
    %364 = vst [vmem:[#allocation8 + $0x34] sm:$0xf] %v332
    %365 = vst [vmem:[#allocation8 + $0x38] sm:$0xf] %v333
    %366 = vst [vmem:[#allocation8 + $0x3c] sm:$0xf] %v334
    // Predicated region
    $region26: #{tpu_custom_call.1} parent=1 // pred_check
      _
    $region27: #{tpu_custom_call.1} parent=1 // pred_check_branch
      %368 = sbr.rel (0) target = $region29
    $region28: #{tpu_custom_call.1} parent=1 // pred_region
      %s370 = ssub.s32 1024, 1024
      %371 = vsyncadd [#allocation4], %s370
      %s372 = sshll.u32 [#allocation8], 4
      %s373 = int_to_ptr.vmem [resolvable:$true] %s372
      %378 = dma.vmem_to_hbm [thread:$0]  %s373, 1024, %s3, [#allocation4], 64, 64, 4
    $region29: #{tpu_custom_call.1} parent=1 // pred_fallthru
      _
    // Predicated region
    $region30: #{tpu_custom_call.1} parent=1 // pred_check
      _
    $region31: #{tpu_custom_call.1} parent=1 // pred_check_branch
      %380 = sbr.rel (0) target = $region33
    $region32: #{tpu_custom_call.1} parent=1 // pred_region
      %381 = dma.done [#allocation4], 1024
    $region33: #{tpu_custom_call.1} parent=1 // pred_fallthru
      _
    %382 = vsyncpa [#allocation3], 1
    %383 = vsyncpa [#allocation6], 1
    %384 = vsyncpa [#allocation4], 1

</llo_original>
